<compile_context>
chip_gen: v7x
topology: tpu7x:2x2x1
jax: 0.10.0
libtpu: 0.0.40
codegen_flags: <defaults>
</compile_context>

<pallas_src>
from functools import lru_cache

import numpy as np
from numpy import sin, cos, tan, pi, arcsin, arctan

import jax
import jax.numpy as jnp
from jax.experimental import pallas as pl
from jax.experimental.pallas import tpu as pltpu


# ----------------------------------------------------------------------------
# Coordinate generation (faithful port of the reference numpy code)
# ----------------------------------------------------------------------------
def get_xy(delta_phi, delta_theta, kernel_size):
    kernel = np.zeros((kernel_size, kernel_size, 2), dtype=np.float64)
    for t_i in range(kernel_size):
        for t_j in range(kernel_size):
            i = int(kernel_size / 2) - t_i
            j = t_j - int(kernel_size / 2)
            if i != 0 and j != 0:
                kernel[t_i, t_j] = (
                    j / np.abs(j) * tan(np.abs(j) * delta_theta),
                    i / np.abs(i) * (tan(np.abs(i) * delta_phi) / cos(np.abs(j) * delta_theta)),
                )
            elif i == 0 and j != 0:
                kernel[t_i, t_j] = (j / np.abs(j) * tan(np.abs(j) * delta_theta), 0)
            elif i != 0 and j == 0:
                kernel[t_i, t_j] = (0, i / np.abs(i) * tan(np.abs(i) * delta_phi))
            elif kernel_size // 2 != 0:
                kernel[t_i, t_j] = (kernel_size // 2, kernel_size // 2)
            else:
                kernel[t_i, t_j] = (1, 1)
    return kernel


def cal_index(h, w, img_r, img_c, kernel_size):
    phi = -((img_r + 0.5) / h * pi - pi / 2)
    theta = (img_c + 0.5) / w * 2 * pi - pi
    delta_phi = pi / h
    delta_theta = 2 * pi / w
    xys = get_xy(delta_phi, delta_theta, kernel_size)
    x = xys[..., 0]
    y = xys[..., 1]
    rho = np.sqrt(x ** 2 + y ** 2)
    v = arctan(rho)
    with np.errstate(divide="ignore", invalid="ignore"):
        new_phi = arcsin(cos(v) * sin(phi) + y * sin(v) * cos(phi) / rho)
        new_theta = theta + arctan(
            x * sin(v) / (rho * cos(phi) * cos(v) - y * sin(phi) * sin(v))
        )
    new_r = (-new_phi + pi / 2) * h / pi - 0.5
    new_c = (new_theta + pi) * w / 2 / pi - 0.5
    new_c = (new_c + w) % w
    new_result = np.stack([new_r, new_c], axis=-1)
    new_result[int(kernel_size / 2), int(kernel_size / 2)] = (img_r, img_c)
    return new_result


def gen_filters_coordinates(h, w, kernel_size=3, stride=1):
    co = np.array(
        [[cal_index(h, w, i, j, kernel_size) for j in range(0, w, stride)]
         for i in range(0, h, stride)]
    )
    return np.ascontiguousarray(co.transpose([4, 0, 1, 2, 3])).copy()


def gen_grid_coordinates(h, w, kernel_size=3, stride=1):
    coordinates = gen_filters_coordinates(h, w, kernel_size, stride).copy()
    coordinates[0] = coordinates[0] * 2 / h - 1
    coordinates[1] = coordinates[1] * 2 / w - 1
    coordinates = coordinates[::-1]
    coordinates = coordinates.transpose(1, 3, 2, 4, 0)
    sz = coordinates.shape
    coordinates = coordinates.reshape(1, sz[0] * sz[1], sz[2] * sz[3], sz[4])
    return coordinates.copy()


# ----------------------------------------------------------------------------
# Dense linear sampling matrix: grid_sample(bilinear, zeros, align_corners=False)
# followed by AvgPool2d(kernel, stride=kernel).  Built once per shape (cached),
# vectorized with np.add.at (no Python triple loop).
# ----------------------------------------------------------------------------
@lru_cache(maxsize=None)
def build_sampling_matrix(H, W, kernel_size=3, stride=1):
    grid = gen_grid_coordinates(H, W, kernel_size, stride)[0]  # (GH, GW, 2): (x, y)
    GH, GW, _ = grid.shape
    H_out = GH // kernel_size
    W_out = GW // kernel_size

    gx = grid[..., 0]
    gy = grid[..., 1]
    # unnormalize (align_corners=False)
    ix = ((gx + 1.0) * W - 1.0) / 2.0
    iy = ((gy + 1.0) * H - 1.0) / 2.0
    x0 = np.floor(ix).astype(np.int64)
    y0 = np.floor(iy).astype(np.int64)
    x1 = x0 + 1
    y1 = y0 + 1
    wx1 = ix - x0
    wx0 = 1.0 - wx1
    wy1 = iy - y0
    wy0 = 1.0 - wy1

    inv = 1.0 / float(kernel_size * kernel_size)
    # Output (pooled) column index for every grid position.
    oidx = (np.arange(GH)[:, None] // kernel_size) * W_out + (np.arange(GW)[None, :] // kernel_size)

    M = np.zeros((H * W, H_out * W_out), dtype=np.float64)
    for yy, wy in ((y0, wy0), (y1, wy1)):
        for xx, wx in ((x0, wx0), (x1, wx1)):
            valid = (yy >= 0) & (yy < H) & (xx >= 0) & (xx < W)  # zero padding outside
            src = yy * W + xx
            wgt = wy * wx * inv
            np.add.at(M, (src[valid], oidx[valid]), wgt[valid])
    return M.astype(np.float32), H_out, W_out


# Device-side (padded, dtype-cast) copy of M, uploaded once per configuration.
_B_DEVICE_CACHE = {}


def _get_padded_B(H, W, kernel_size, stride, Kp, Np, dtype):
    key = (H, W, kernel_size, stride, Kp, Np, np.dtype(dtype).name)
    if key not in _B_DEVICE_CACHE:
        M_np, H_out, W_out = build_sampling_matrix(H, W, kernel_size, stride)
        K, Nd = M_np.shape
        M_pad = np.zeros((Kp, Np), dtype=np.float32)
        M_pad[:K, :Nd] = M_np
        _B_DEVICE_CACHE[key] = (jnp.asarray(M_pad, dtype=dtype), H_out, W_out)
    return _B_DEVICE_CACHE[key]


# ----------------------------------------------------------------------------
# Pallas matmul kernels (hot path): out = A @ B with f32 accumulation on MXU.
# ----------------------------------------------------------------------------
def _matmul_kernel_single_k(a_ref, b_ref, o_ref):
    # One k block per (i, j): write directly, no scratch needed.
    o_ref[...] = jnp.dot(a_ref[...], b_ref[...],
                         preferred_element_type=jnp.float32).astype(o_ref.dtype)


def _matmul_kernel_inplace(a_ref, b_ref, o_ref):
    # Multi k block, f32 output: accumulate directly into the resident output tile.
    @pl.when(pl.program_id(2) == 0)
    def _():
        o_ref[...] = jnp.zeros_like(o_ref)

    o_ref[...] += jnp.dot(a_ref[...], b_ref[...], preferred_element_type=jnp.float32)


def _matmul_kernel_acc(a_ref, b_ref, o_ref, acc_ref):
    # Multi k block, non-f32 output: f32 scratch accumulator, cast on last step.
    @pl.when(pl.program_id(2) == 0)
    def _():
        acc_ref[...] = jnp.zeros_like(acc_ref)

    acc_ref[...] += jnp.dot(a_ref[...], b_ref[...], preferred_element_type=jnp.float32)

    @pl.when(pl.program_id(2) == pl.num_programs(2) - 1)
    def _():
        o_ref[...] = acc_ref[...].astype(o_ref.dtype)


def _round_up(x, m):
    return ((x + m - 1) // m) * m


def _pick_tile(dim_padded, candidates=(512, 256, 128)):
    for c in candidates:
        if dim_padded % c == 0:
            return c
    return 128


def pallas_matmul(a, b, out_dtype, tm, tn, tk):
    Mp, Kp = a.shape
    Kp2, Np = b.shape
    assert Kp == Kp2
    assert Mp % tm == 0 and Np % tn == 0 and Kp % tk == 0
    k_blocks = Kp // tk
    grid = (Mp // tm, Np // tn, k_blocks)

    isz = lambda d: np.dtype(d).itemsize
    flops = 2 * Mp * Kp * Np
    bytes_accessed = (Mp * Kp * isz(a.dtype) + Kp * Np * isz(b.dtype)
                      + Mp * Np * isz(out_dtype))
    cost = pl.CostEstimate(flops=flops, transcendentals=0,
                           bytes_accessed=bytes_accessed)

    use_acc = (k_blocks > 1) and (np.dtype(out_dtype) != np.dtype(np.float32))
    if use_acc:
        kernel = _matmul_kernel_acc
        scratch = (pltpu.VMEM((tm, tn), jnp.float32),)
    elif k_blocks > 1:
        kernel = _matmul_kernel_inplace
        scratch = ()
    else:
        kernel = _matmul_kernel_single_k
        scratch = ()

    # Double-buffered A/B/out tiles (+ optional accumulator), with headroom.
    vmem_needed = (2 * tm * tk * isz(a.dtype)
                   + 2 * tk * tn * isz(b.dtype)
                   + 2 * tm * tn * isz(out_dtype)
                   + (tm * tn * 4 if use_acc else 0))
    vmem_limit = int(min(64 << 20, max(16 << 20, 2 * vmem_needed)))

    return pl.pallas_call(
        kernel,
        out_shape=jax.ShapeDtypeStruct((Mp, Np), out_dtype),
        grid_spec=pltpu.PrefetchScalarGridSpec(
            num_scalar_prefetch=0,
            grid=grid,
            in_specs=[
                pl.BlockSpec((tm, tk), lambda i, j, k: (i, k)),
                pl.BlockSpec((tk, tn), lambda i, j, k: (k, j)),
            ],
            out_specs=pl.BlockSpec((tm, tn), lambda i, j, k: (i, j)),
            scratch_shapes=scratch,
        ),
        compiler_params=pltpu.CompilerParams(
            dimension_semantics=(pltpu.PARALLEL, pltpu.PARALLEL, pltpu.ARBITRARY),
            vmem_limit_bytes=vmem_limit,
        ),
        cost_estimate=cost,
    )(a, b)


# ----------------------------------------------------------------------------
# SphereAvgPool2D forward
# ----------------------------------------------------------------------------
def sphere_avg_pool_2d(x, kernel_size=3, stride=1, weight_dtype=None):
    """x: NCHW. Returns NCHW' in x.dtype.

    weight_dtype: optionally force the sampling-matrix / operand dtype
    (e.g. jnp.bfloat16 on v5e for 2x MXU throughput) — accumulation stays f32.
    """
    N, C, H, W = x.shape
    NC, K = N * C, H * W
    out_dtype = x.dtype
    op_dtype = np.dtype(weight_dtype) if weight_dtype is not None else np.dtype(x.dtype)

    M_np, H_out, W_out = build_sampling_matrix(H, W, kernel_size, stride)
    Nd = H_out * W_out

    # --- tile selection -------------------------------------------------------
    sub = 16 if op_dtype == np.dtype(jnp.bfloat16) else 8
    if NC <= 256:
        tm = _round_up(NC, sub)          # full row block: single i step, B streamed once
        Mp = tm
    else:
        tm = 256
        Mp = _round_up(NC, tm)
    Kp = _round_up(K, 128)
    tk = _pick_tile(Kp)
    Np = _round_up(Nd, 128)
    tn = _pick_tile(Np)
    if Np // tn == 1 and Np >= 256 and (Np // 2) % 128 == 0:
        tn = Np // 2                     # keep a parallel axis of extent >=2 (v7x megacore)

    # --- operands -------------------------------------------------------------
    B, H_out, W_out = _get_padded_B(H, W, kernel_size, stride, Kp, Np, op_dtype)

    A = x.reshape(NC, K)                 # free (contiguous) reshape
    if np.dtype(A.dtype) != op_dtype:
        A = A.astype(op_dtype)
    if (Mp, Kp) != (NC, K):
        A = jnp.pad(A, ((0, Mp - NC), (0, Kp - K)))

    out = pallas_matmul(A, B, out_dtype, tm, tn, tk)
    if (Mp, Np) != (NC, Nd):
        out = out[:NC, :Nd]
    return out.reshape(N, C, H_out, W_out)


# ----------------------------------------------------------------------------
# Pure-numpy reference: bilinear grid_sample (zeros, align_corners=False)
# followed by AvgPool2d(kernel, stride=kernel).
# ----------------------------------------------------------------------------
def _reference_numpy(x_np, H, W, kernel_size=3, stride=1):
    grid = gen_grid_coordinates(H, W, kernel_size, stride)[0]
    gx, gy = grid[..., 0], grid[..., 1]
    ix = ((gx + 1.0) * W - 1.0) / 2.0
    iy = ((gy + 1.0) * H - 1.0) / 2.0
    x0 = np.floor(ix).astype(np.int64)
    y0 = np.floor(iy).astype(np.int64)
    x1, y1 = x0 + 1, y0 + 1
    wx1 = ix - x0
    wx0 = 1.0 - wx1
    wy1 = iy - y0
    wy0 = 1.0 - wy1

    def gather(yy, xx):
        valid = (yy >= 0) & (yy < H) & (xx >= 0) & (xx < W)
        yyc = np.clip(yy, 0, H - 1)
        xxc = np.clip(xx, 0, W - 1)
        return x_np[:, :, yyc, xxc] * valid

    samp = (gather(y0, x0) * (wy0 * wx0) + gather(y0, x1) * (wy0 * wx1)
            + gather(y1, x0) * (wy1 * wx0) + gather(y1, x1) * (wy1 * wx1))
    Nb, Cb, GH, GW = samp.shape
    Ho, Wo = GH // kernel_size, GW // kernel_size
    samp = samp.reshape(Nb, Cb, Ho, kernel_size, Wo, kernel_size)
    return samp.mean(axis=(3, 5))


if __name__ == "__main__":
    key = jax.random.PRNGKey(0)
    x = jax.random.normal(key, (2, 4, 16, 16), dtype=jnp.float32)

    out = sphere_avg_pool_2d(x, kernel_size=3, stride=1)
    out = jax.block_until_ready(out)

    assert out.shape == (2, 4, 16, 16), out.shape
    assert out.dtype == x.dtype, out.dtype

    ref = _reference_numpy(np.asarray(x, dtype=np.float64), 16, 16, 3, 1)
    np.testing.assert_allclose(np.asarray(out, dtype=np.float64), ref,
                               rtol=1e-4, atol=1e-4)

    # Run a second time to confirm the cached sampling-matrix path also works.
    out2 = jax.block_until_ready(sphere_avg_pool_2d(x, kernel_size=3, stride=1))
    np.testing.assert_allclose(np.asarray(out2), np.asarray(out), rtol=0, atol=0)

    print("KERNEL_OK")
</pallas_src>

<mosaic_0001>
module attributes {stable_mosaic.version = 11 : i64} {
  func.func @_matmul_kernel_single_k(%arg0: i32, %arg1: i32, %arg2: i32, %arg3: memref<8x256xf32, #tpu.memory_space<vmem>>, %arg4: memref<256x128xf32, #tpu.memory_space<vmem>>, %arg5: memref<8x128xf32, #tpu.memory_space<vmem>>) attributes {dimension_semantics = [#tpu.dimension_semantics<parallel>, #tpu.dimension_semantics<parallel>, #tpu.dimension_semantics<arbitrary>], iteration_bounds = array<i64: 1, 2, 1>, scalar_prefetch = 0 : i64, scratch_operands = 0 : i64, tpu.core_type = #tpu.core_type<tc>, window_params = [{transform_indices = @transform_0, window_bounds = array<i64: 8, 256>}, {transform_indices = @transform_1, window_bounds = array<i64: 256, 128>}, {transform_indices = @transform_2, window_bounds = array<i64: 8, 128>}]} {
    %c0 = arith.constant 0 : index
    %c0_0 = arith.constant 0 : index
    %0 = vector.load %arg3[%c0, %c0_0] : memref<8x256xf32, #tpu.memory_space<vmem>>, vector<8x256xf32>
    %c0_1 = arith.constant 0 : index
    %c0_2 = arith.constant 0 : index
    %1 = vector.load %arg4[%c0_1, %c0_2] : memref<256x128xf32, #tpu.memory_space<vmem>>, vector<256x128xf32>
    %cst = arith.constant dense<0.000000e+00> : vector<8x128xf32>
    %2 = tpu.matmul %0, %1, %cst {dimension_numbers = #tpu.dot_dimension_numbers<[1], [0], [0], [1], [0, 0, 1, 1], [], []>} : vector<8x256xf32>, vector<256x128xf32>, vector<8x128xf32> -> vector<8x128xf32>
    %c0_3 = arith.constant 0 : index
    %c0_4 = arith.constant 0 : index
    %3 = vector.load %arg5[%c0_3, %c0_4] : memref<8x128xf32, #tpu.memory_space<vmem>>, vector<8x128xf32>
    tpu.vector_store %arg5[%c0_3, %c0_4], %2 {strides = array<i32>} : memref<8x128xf32, #tpu.memory_space<vmem>>, vector<8x128xf32>,
    return
  }
  func.func @transform_0(%arg0: i32, %arg1: i32, %arg2: i32) -> (i32, i32) {
    %c0_i32 = arith.constant 0 : i32
    return %arg0, %arg2 : i32, i32
  }
  func.func @transform_1(%arg0: i32, %arg1: i32, %arg2: i32) -> (i32, i32) {
    %c0_i32 = arith.constant 0 : i32
    return %arg2, %arg1 : i32, i32
  }
  func.func @transform_2(%arg0: i32, %arg1: i32, %arg2: i32) -> (i32, i32) {
    %c0_i32 = arith.constant 0 : i32
    return %arg0, %arg1 : i32, i32
  }
}

</mosaic_0001>

<llo_original>
// kernel: tpu_custom_call.1
$region0: #{tpu_custom_call.1}
  #allocation0 [shape = 'u32[]', space=smem, size = 0x4, offset = 0x4, fixed_abs, tag = 'smem constant byte address 0x4 - core index']
  #allocation1 [shape = 'u32[144,128]{1,0:T(1,128)}', space=vmem, size = 0x12000, scoped, tag = 'internal scratch']
  %s0 = inlined_call_operand.hbm [shape: f32[8,256], index: 0, kind: input, shape index: {}]
  %s1 = inlined_call_operand.hbm [shape: f32[256,256], index: 1, kind: input, shape index: {}]
  %s2 = inlined_call_operand.hbm [shape: f32[8,256], index: 2, kind: output, shape index: {}]
  %s3 = sld [smem:[#allocation0]]
  $region49: #{tpu_custom_call.1} parent=0
    _
  %s5 = ssub.s32 1, %s3
  %s6 = scalar_select 0, %s5, %s3
  $region1: #{tpu_custom_call.1} parent=0
    #allocation2 [shape = 'u8[8192]{0}', space=vmem, size = 0x2000, scoped, tag = 'input window, operand 0, single buffered']
    #allocation3 [shape = 's32[2]{0}', space=sflag, size = 0x8, scoped, tag = 'scoped memory for tpu_custom_call.1']
    #allocation4 [shape = 's32[2]{0}', space=sflag, size = 0x8, scoped, tag = 'scoped memory for tpu_custom_call.1']
    #allocation5 [shape = 'u8[262144]{0}', space=vmem, size = 0x40000, scoped, tag = 'input window, operand 1']
    #allocation6 [shape = 's32[2]{0}', space=sflag, size = 0x8, scoped, tag = 'scoped memory for tpu_custom_call.1']
    #allocation7 [shape = 'u8[8192]{0}', space=vmem, size = 0x2000, scoped, tag = 'output window, operand 0']
    %7 = vsyncpa [#allocation3], 0
    %8 = vsyncpa [#allocation6], 0
    %s9 = scalar_lea.sflag [#allocation6], 1
    %10 = vsyncpa %s9, 0
    %11 = vsyncpa [#allocation4], 0
    %s12 = scalar_lea.sflag [#allocation4], 1
    %13 = vsyncpa %s12, 0
    loop: start=0, step=1, limit=4
    $region2: #{tpu_custom_call.1} parent=1 // loop_pre_header
      _
    $region3: #{tpu_custom_call.1} parent=1 // loop_header
      %s15 = sphi 0, %s19
      %p16 = scmp.ge.s32.totalorder %s15, 4
      %s22 = sphi 0, %s41
      %s23 = sphi 0, %s37
      %s24 = sphi 0, %s33
      %s25 = sphi 0, %s22
      %s26 = sphi 0, %s23
      %s27 = sphi 0, %s24
      %s28 = sphi 0, %s25
      %s29 = sphi 0, %s26
      %s30 = sphi 0, %s27
      %s46 = sphi 0, %s48
      %s49 = sphi 0, %s46
      %s50 = sphi 0, %s49
      %s66 = sphi 0, %s50
      %s74 = sphi 0, %s76
      %s77 = sphi 0, %s74
      %s78 = sphi 0, %s77
      %s94 = sphi 0, %s78
      %s102 = sphi 0, %s104
      %s105 = sphi 0, %s102
      %s106 = sphi 0, %s105
      %s122 = sphi 0, %s106
    $region4: #{tpu_custom_call.1} parent=1 // loop_header_branch
      %18 = sbr.rel (%p16) target = $region8
    $region5: #{tpu_custom_call.1} parent=1 // loop_body
      %s20 = ssub.s32 %s15, 1
      %s21 = ssub.s32 %s15, 2
      %s31 = sadd.s32 1, %s24
      %p32 = scmp.ge.s32.totalorder %s31, 1
      %s33 = scalar_select %p32, 0, %s31
      %s34 = sadd.s32 1, %s23
      %s35 = scalar_select %p32, %s34, %s23
      %p36 = scmp.ge.s32.totalorder %s35, 2
      %s37 = scalar_select %p36, 0, %s35
      %s38 = sadd.s32 1, %s22
      %s39 = scalar_select %p36, %s38, %s22
      %p40 = scmp.ge.s32.totalorder %s39, 1
      %s41 = scalar_select %p40, 0, %s39
      %s42 = ssub.s32 %s22, %s41
      %s43 = ssub.s32 %s24, %s33
      %s44 = sor.u32 %s42, %s43
      %p45 = scmp.eq.s32.totalorder %s44, 0
      %s47 = sadd.s32 %s46, 1
      %s48 = scalar_select %p45, %s46, %s47
      %p51 = pneg %p45
      %p52 = scmp.eq.s32.totalorder %s15, 1
      %p53 = por %p51, %p52
      %p54 = scmp.ne.s32.totalorder %s46, %s49
      %p55 = scmp.eq.s32.totalorder %s15, 0
      %p56 = por %p54, %p55
      %p57 = scmp.ne.s32.totalorder %s46, %s49
      %p58 = scmp.eq.s32.totalorder %s20, 1
      %p59 = por %p57, %p58
      %p60 = scmp.ne.s32.totalorder %s49, %s50
      %p61 = scmp.eq.s32.totalorder %s20, 0
      %p62 = por %p60, %p61
      %p63 = scmp.ne.s32.totalorder %s49, %s50
      %p64 = scmp.eq.s32.totalorder %s21, 1
      %p65 = por %p63, %p64
      %p67 = scmp.ne.s32.totalorder %s50, %s66
      %p68 = scmp.eq.s32.totalorder %s21, 0
      %p69 = por %p67, %p68
      %s70 = ssub.s32 %s24, %s33
      %s71 = ssub.s32 %s23, %s37
      %s72 = sor.u32 %s70, %s71
      %p73 = scmp.eq.s32.totalorder %s72, 0
      %s75 = sadd.s32 %s74, 1
      %s76 = scalar_select %p73, %s74, %s75
      %p79 = pneg %p73
      %p80 = scmp.eq.s32.totalorder %s15, 1
      %p81 = por %p79, %p80
      %p82 = scmp.ne.s32.totalorder %s74, %s77
      %p83 = scmp.eq.s32.totalorder %s15, 0
      %p84 = por %p82, %p83
      %p85 = scmp.ne.s32.totalorder %s74, %s77
      %p86 = scmp.eq.s32.totalorder %s20, 1
      %p87 = por %p85, %p86
      %p88 = scmp.ne.s32.totalorder %s77, %s78
      %p89 = scmp.eq.s32.totalorder %s20, 0
      %p90 = por %p88, %p89
      %p91 = scmp.ne.s32.totalorder %s77, %s78
      %p92 = scmp.eq.s32.totalorder %s21, 1
      %p93 = por %p91, %p92
      %p95 = scmp.ne.s32.totalorder %s78, %s94
      %p96 = scmp.eq.s32.totalorder %s21, 0
      %p97 = por %p95, %p96
      %s98 = ssub.s32 %s22, %s41
      %s99 = ssub.s32 %s23, %s37
      %s100 = sor.u32 %s98, %s99
      %p101 = scmp.eq.s32.totalorder %s100, 0
      %s103 = sadd.s32 %s102, 1
      %s104 = scalar_select %p101, %s102, %s103
      %p107 = pneg %p101
      %p108 = scmp.eq.s32.totalorder %s15, 1
      %p109 = por %p107, %p108
      %p110 = scmp.ne.s32.totalorder %s102, %s105
      %p111 = scmp.eq.s32.totalorder %s15, 0
      %p112 = por %p110, %p111
      %p113 = scmp.ne.s32.totalorder %s102, %s105
      %p114 = scmp.eq.s32.totalorder %s20, 1
      %p115 = por %p113, %p114
      %p116 = scmp.ne.s32.totalorder %s105, %s106
      %p117 = scmp.eq.s32.totalorder %s20, 0
      %p118 = por %p116, %p117
      %p119 = scmp.ne.s32.totalorder %s105, %s106
      %p120 = scmp.eq.s32.totalorder %s21, 1
      %p121 = por %p119, %p120
      %p123 = scmp.ne.s32.totalorder %s106, %s122
      %p124 = scmp.eq.s32.totalorder %s21, 0
      %p125 = por %p123, %p124
      %p126 = scmp.le.s32.totalorder 1, %s15
      %p127 = scmp.lt.s32.totalorder %s15, 3
      %p128 = pnand %p126, %p127
      %p129 = pneg %p128
      // Predicated region
      $region9: #{tpu_custom_call.1} parent=5 // pred_check
        _
      $region10: #{tpu_custom_call.1} parent=5 // pred_check_branch
        %131 = sbr.rel (%p128) target = $region12
      $region11: #{tpu_custom_call.1} parent=5 // pred_region
        %s132 = ssub.s32 %s15, 1
        // Predicated region
        $region13: #{tpu_custom_call.1} parent=11 // pred_check
          %p133 = pneg %p62
        $region14: #{tpu_custom_call.1} parent=11 // pred_check_branch
          %135 = sbr.rel (%p133) target = $region16
        $region15: #{tpu_custom_call.1} parent=11 // pred_region
          %s136 = smul.u32 2, %s27
          %s138 = ssub.s32 256, 256
          %139 = vsyncadd [#allocation3], %s138
          %s140 = smul.addr %s25, 2
          %s141 = sadd.s32 %s136, %s140
          %s142 = smul.addr %s141, 128
          %s143 = scalar_lea.hbm %s0, %s142
          %s145 = sshll.u32 [#allocation2], 4
          %s146 = int_to_ptr.vmem [resolvable:$true] %s145
          %148 = dma.hbm_to_vmem [thread:$0]  %s143, 256, %s146, [#allocation3]
        $region16: #{tpu_custom_call.1} parent=11 // pred_fallthru
          _
      $region12: #{tpu_custom_call.1} parent=5 // pred_fallthru
        _
      %p149 = scmp.lt.s32.totalorder %s15, 2
      // Predicated region
      $region17: #{tpu_custom_call.1} parent=5 // pred_check
        %p150 = pneg %p149
      $region18: #{tpu_custom_call.1} parent=5 // pred_check_branch
        %152 = sbr.rel (%p150) target = $region20
      $region19: #{tpu_custom_call.1} parent=5 // pred_region
        // Predicated region
        $region21: #{tpu_custom_call.1} parent=19 // pred_check
          %p153 = pneg %p84
        $region22: #{tpu_custom_call.1} parent=19 // pred_check_branch
          %155 = sbr.rel (%p153) target = $region24
        $region23: #{tpu_custom_call.1} parent=19 // pred_region
          %s156 = sand.u32 %s74, 1
          %s157 = scalar_lea.sflag [#allocation6], %s156
          %s158 = sand.u32 %s74, 1
          %s159 = smul.addr %s158, 256
          %s160 = scalar_lea.vmem [#allocation5], %s159
          %s161 = smul.u32 32, %s24
          %s163 = ssub.s32 4096, 4096
          %164 = vsyncadd %s157, %s163
          %s165 = smul.addr %s161, 2
          %s166 = sadd.s32 %s23, %s165
          %s167 = smul.addr %s166, 128
          %s168 = scalar_lea.hbm %s1, %s167
          %s169 = sshll.u32 %s160, 4
          %s170 = int_to_ptr.vmem [resolvable:$true] %s169
          %175 = dma.hbm_to_vmem [thread:$0]  %s168, 4096, %s170, %s157, 256, 128, 8
        $region24: #{tpu_custom_call.1} parent=19 // pred_fallthru
          _
      $region20: #{tpu_custom_call.1} parent=5 // pred_fallthru
        _
      %p176 = scmp.le.s32.totalorder 1, %s15
      %p177 = scmp.lt.s32.totalorder %s15, 3
      %p178 = pnand %p176, %p177
      %p179 = pneg %p178
      // Predicated region
      $region25: #{tpu_custom_call.1} parent=5 // pred_check
        _
      $region26: #{tpu_custom_call.1} parent=5 // pred_check_branch
        %181 = sbr.rel (%p178) target = $region28
      $region27: #{tpu_custom_call.1} parent=5 // pred_region
        %s182 = ssub.s32 %s15, 1
        // Predicated region
        $region29: #{tpu_custom_call.1} parent=27 // pred_check
          %p183 = pneg %p62
        $region30: #{tpu_custom_call.1} parent=27 // pred_check_branch
          %185 = sbr.rel (%p183) target = $region32
        $region31: #{tpu_custom_call.1} parent=27 // pred_region
          %186 = dma.done [#allocation3], 256
        $region32: #{tpu_custom_call.1} parent=27 // pred_fallthru
          _
        %s187 = sand.u32 %s77, 1
        %s188 = scalar_lea.sflag [#allocation6], %s187
        %s189 = sand.u32 %s77, 1
        %s190 = smul.addr %s189, 256
        %s191 = scalar_lea.vmem [#allocation5], %s190
        // Predicated region
        $region33: #{tpu_custom_call.1} parent=27 // pred_check
          %p192 = pneg %p90
        $region34: #{tpu_custom_call.1} parent=27 // pred_check_branch
          %194 = sbr.rel (%p192) target = $region36
        $region35: #{tpu_custom_call.1} parent=27 // pred_region
          %195 = dma.done %s188, 4096
        $region36: #{tpu_custom_call.1} parent=27 // pred_fallthru
          _
        %p196 = pneg %p62
        %p197 = pneg %p59
        %s198 = sand.u32 %s77, 1
        %s199 = scalar_lea.sflag [#allocation6], %s198
        %s200 = sand.u32 %s77, 1
        %s201 = smul.addr %s200, 256
        %s202 = scalar_lea.vmem [#allocation5], %s201
        %p203 = pneg %p90
        %p204 = pneg %p87
        %p205 = pneg %p118
        %p206 = pneg %p115
        %s207 = sand.u32 %s105, 1
        %s208 = scalar_lea.sflag [#allocation4], %s207
        %s209 = sand.u32 %s105, 1
        %s210 = smul.addr %s209, 8
        %s211 = scalar_lea.vmem [#allocation7], %s210
        %s212 = smul.u32 2, %s27
        %s213 = smul.u32 32, %s27
        %v214 = vld [vmem:[#allocation2] sm:$0xff]
        %v215 = vld [vmem:[#allocation2 + $0x8] sm:$0xff]
        %v216 = vld [vmem:[%s191] sm:$0xff]
        %v217 = vld [vmem:[%s191 + $0x8] sm:$0xff]
        %v218 = vld [vmem:[%s191 + $0x10] sm:$0xff]
        %v219 = vld [vmem:[%s191 + $0x18] sm:$0xff]
        %v220 = vld [vmem:[%s191 + $0x20] sm:$0xff]
        %v221 = vld [vmem:[%s191 + $0x28] sm:$0xff]
        %v222 = vld [vmem:[%s191 + $0x30] sm:$0xff]
        %v223 = vld [vmem:[%s191 + $0x38] sm:$0xff]
        %v224 = vld [vmem:[%s191 + $0x40] sm:$0xff]
        %v225 = vld [vmem:[%s191 + $0x48] sm:$0xff]
        %v226 = vld [vmem:[%s191 + $0x50] sm:$0xff]
        %v227 = vld [vmem:[%s191 + $0x58] sm:$0xff]
        %v228 = vld [vmem:[%s191 + $0x60] sm:$0xff]
        %v229 = vld [vmem:[%s191 + $0x68] sm:$0xff]
        %v230 = vld [vmem:[%s191 + $0x70] sm:$0xff]
        %v231 = vld [vmem:[%s191 + $0x78] sm:$0xff]
        %v232 = vld [vmem:[%s191 + $0x80] sm:$0xff]
        %v233 = vld [vmem:[%s191 + $0x88] sm:$0xff]
        %v234 = vld [vmem:[%s191 + $0x90] sm:$0xff]
        %v235 = vld [vmem:[%s191 + $0x98] sm:$0xff]
        %v236 = vld [vmem:[%s191 + $0xa0] sm:$0xff]
        %v237 = vld [vmem:[%s191 + $0xa8] sm:$0xff]
        %v238 = vld [vmem:[%s191 + $0xb0] sm:$0xff]
        %v239 = vld [vmem:[%s191 + $0xb8] sm:$0xff]
        %v240 = vld [vmem:[%s191 + $0xc0] sm:$0xff]
        %v241 = vld [vmem:[%s191 + $0xc8] sm:$0xff]
        %v242 = vld [vmem:[%s191 + $0xd0] sm:$0xff]
        %v243 = vld [vmem:[%s191 + $0xd8] sm:$0xff]
        %v244 = vld [vmem:[%s191 + $0xe0] sm:$0xff]
        %v245 = vld [vmem:[%s191 + $0xe8] sm:$0xff]
        %v246 = vld [vmem:[%s191 + $0xf0] sm:$0xff]
        %v247 = vld [vmem:[%s191 + $0xf8] sm:$0xff]
        %248 = vmatprep.subr.mxu0 0.0
        %249 = vmatpush1.msra.mxu0 %v216
        %250 = vmatprep.subr.mxu0 0.0
        %251 = vmatpush1.msra.mxu0 %v217
        %252 = vmatprep.subr.mxu0 0.0
        %253 = vmatpush1.msra.mxu0 %v218
        %254 = vmatprep.subr.mxu0 0.0
        %255 = vmatpush1.msra.mxu0 %v219
        %256 = vmatprep.subr.mxu0 0.0
        %257 = vmatpush1.msra.mxu0 %v220
        %258 = vmatprep.subr.mxu0 0.0
        %259 = vmatpush1.msra.mxu0 %v221
        %260 = vmatprep.subr.mxu0 0.0
        %261 = vmatpush1.msra.mxu0 %v222
        %262 = vmatprep.subr.mxu0 0.0
        %263 = vmatpush1.msra.mxu0 %v223
        %264 = vmatprep.subr.mxu0 0.0
        %265 = vmatpush1.msra.mxu0 %v224
        %266 = vmatprep.subr.mxu0 0.0
        %267 = vmatpush1.msra.mxu0 %v225
        %268 = vmatprep.subr.mxu0 0.0
        %269 = vmatpush1.msra.mxu0 %v226
        %270 = vmatprep.subr.mxu0 0.0
        %271 = vmatpush1.msra.mxu0 %v227
        %272 = vmatprep.subr.mxu0 0.0
        %273 = vmatpush1.msra.mxu0 %v228
        %274 = vmatprep.subr.mxu0 0.0
        %275 = vmatpush1.msra.mxu0 %v229
        %276 = vmatprep.subr.mxu0 0.0
        %277 = vmatpush1.msra.mxu0 %v230
        %278 = vmatprep.subr.mxu0 0.0
        %279 = vmatpush1.msra.mxu0 %v231
        %280 = vmatprep.subr.mxu0 0.0
        %281 = vmatpush1.msra.mxu0 %v232
        %282 = vmatprep.subr.mxu0 0.0
        %283 = vmatpush1.msra.mxu0 %v233
        %284 = vmatprep.subr.mxu0 0.0
        %285 = vmatpush1.msra.mxu0 %v234
        %286 = vmatprep.subr.mxu0 0.0
        %287 = vmatpush1.msra.mxu0 %v235
        %288 = vmatprep.subr.mxu0 0.0
        %289 = vmatpush1.msra.mxu0 %v236
        %290 = vmatprep.subr.mxu0 0.0
        %291 = vmatpush1.msra.mxu0 %v237
        %292 = vmatprep.subr.mxu0 0.0
        %293 = vmatpush1.msra.mxu0 %v238
        %294 = vmatprep.subr.mxu0 0.0
        %295 = vmatpush1.msra.mxu0 %v239
        %296 = vmatprep.subr.mxu0 0.0
        %297 = vmatpush1.msra.mxu0 %v240
        %298 = vmatprep.subr.mxu0 0.0
        %299 = vmatpush1.msra.mxu0 %v241
        %300 = vmatprep.subr.mxu0 0.0
        %301 = vmatpush1.msra.mxu0 %v242
        %302 = vmatprep.subr.mxu0 0.0
        %303 = vmatpush1.msra.mxu0 %v243
        %304 = vmatprep.subr.mxu0 0.0
        %305 = vmatpush1.msra.mxu0 %v244
        %306 = vmatprep.subr.mxu0 0.0
        %307 = vmatpush1.msra.mxu0 %v245
        %308 = vmatprep.subr.mxu0 0.0
        %309 = vmatpush1.msra.mxu0 %v246
        %310 = vmatprep.subr.mxu0 0.0
        %311 = vmatpush1.msra.mxu0 %v247
        %312 = vmatprep.mubr.f32.mxu0 %v215
        %313 = vmatmul.mubr.f32.gmra.mrb[0].mxu0 %v214
        %v314 = vpop.f32.mrb[0].mxu0
        %v315 = vadd.f32 0.0, %v314
        %v316 = vpop.f32.mrb[0].mxu0
        %317 = vdwg.mxu0
        %318 = vst [vmem:[%s211] sm:$0xff] %v315
        %s319 = sand.u32 %s105, 1
        %s320 = scalar_lea.sflag [#allocation4], %s319
        %s321 = sand.u32 %s105, 1
        %s322 = smul.addr %s321, 8
        %s323 = scalar_lea.vmem [#allocation7], %s322
        // Predicated region
        $region37: #{tpu_custom_call.1} parent=27 // pred_check
          %p324 = pneg %p115
        $region38: #{tpu_custom_call.1} parent=27 // pred_check_branch
          %326 = sbr.rel (%p324) target = $region40
        $region39: #{tpu_custom_call.1} parent=27 // pred_region
          %s328 = ssub.s32 128, 128
          %329 = vsyncadd %s320, %s328
          %s330 = smul.addr %s25, 2
          %s331 = sadd.s32 %s26, %s330
          %s332 = smul.addr %s331, 128
          %s333 = scalar_lea.hbm %s2, %s332
          %s335 = sshll.u32 %s323, 4
          %s336 = int_to_ptr.vmem [resolvable:$true] %s335
          %338 = dma.vmem_to_hbm [thread:$0]  %s336, 128, %s333, %s320
        $region40: #{tpu_custom_call.1} parent=27 // pred_fallthru
          _
      $region28: #{tpu_custom_call.1} parent=5 // pred_fallthru
        _
      %p339 = scmp.le.s32.totalorder 2, %s15
      // Predicated region
      $region41: #{tpu_custom_call.1} parent=5 // pred_check
        %p340 = pneg %p339
      $region42: #{tpu_custom_call.1} parent=5 // pred_check_branch
        %342 = sbr.rel (%p340) target = $region44
      $region43: #{tpu_custom_call.1} parent=5 // pred_region
        %s343 = ssub.s32 %s15, 2
        // Predicated region
        $region45: #{tpu_custom_call.1} parent=43 // pred_check
          %p344 = pneg %p121
        $region46: #{tpu_custom_call.1} parent=43 // pred_check_branch
          %346 = sbr.rel (%p344) target = $region48
        $region47: #{tpu_custom_call.1} parent=43 // pred_region
          %s347 = sand.u32 %s106, 1
          %s348 = scalar_lea.sflag [#allocation4], %s347
          %s349 = sand.u32 %s106, 1
          %s350 = smul.addr %s349, 8
          %s351 = scalar_lea.vmem [#allocation7], %s350
          %352 = dma.done %s348, 128
        $region48: #{tpu_custom_call.1} parent=43 // pred_fallthru
          _
      $region44: #{tpu_custom_call.1} parent=5 // pred_fallthru
        _
    $region6: #{tpu_custom_call.1} parent=1 // loop_footer
      %s19 = sadd.s32 1, %s15
    $region7: #{tpu_custom_call.1} parent=1 // loop_footer_branch
      %14 = sbr.rel target = $region3
    $region8: #{tpu_custom_call.1} parent=1 // loop_exit
      _
    %353 = vsyncpa [#allocation3], 1
    %s354 = scalar_lea.sflag [#allocation3], 1
    %355 = vsyncpa %s354, 1
    %356 = vsyncpa [#allocation6], 1
    %s357 = scalar_lea.sflag [#allocation6], 1
    %358 = vsyncpa %s357, 1
    %359 = vsyncpa [#allocation4], 1
    %s360 = scalar_lea.sflag [#allocation4], 1
    %361 = vsyncpa %s360, 1

</llo_original>
